<compile_context>
chip_gen: v7x
topology: tpu7x:2x2x1
jax: 0.10.0
libtpu: 0.0.40
codegen_flags: <defaults>
</compile_context>

<pallas_src>
import jax
import jax.numpy as jnp
from jax.experimental import pallas as pl
from jax.experimental.pallas import tpu as pltpu

_PAD = 128  # padded feature width for all hidden / output dims


def _leaky_relu(x, slope=0.2):
    # valid for 0 <= slope <= 1 (here 0.2, matching nn.LeakyReLU(0.2))
    return jnp.maximum(x, slope * x)


def _property_model_kernel(z_ref,
                           w1_ref, b1_ref,
                           w2_ref, b2_ref,
                           w3_ref, b3_ref,
                           w4_ref, b4_ref,
                           out_ref):
    # z tile: (TB, z_dim) bf16; weights bf16; biases f32; out tile (TB, 128) f32.
    z = z_ref[...]

    # Linear 1: z_dim -> 128 (padded from 80), LeakyReLU(0.2)
    h1 = jnp.dot(z, w1_ref[...], preferred_element_type=jnp.float32) + b1_ref[...]
    h1 = _leaky_relu(h1)

    # Linear 2: 128 -> 128 (padded from 80x80), LeakyReLU(0.2)
    h2 = jnp.dot(h1.astype(jnp.bfloat16), w2_ref[...],
                 preferred_element_type=jnp.float32) + b2_ref[...]
    h2 = _leaky_relu(h2)

    # Linear 3: 128 -> 128 (padded from 80x40), LeakyReLU(0.2)
    h3 = jnp.dot(h2.astype(jnp.bfloat16), w3_ref[...],
                 preferred_element_type=jnp.float32) + b3_ref[...]
    h3 = _leaky_relu(h3)

    # Linear 4: 128 -> 128 (padded from 40 x num_classes), no activation
    h4 = jnp.dot(h3.astype(jnp.bfloat16), w4_ref[...],
                 preferred_element_type=jnp.float32) + b4_ref[...]

    out_ref[...] = h4.astype(out_ref.dtype)


def init_property_model_params(key, z_dim, num_classes, dtype=jnp.float32):
    """Synthetic params matching the nn.Linear stack.

    Weights stored transposed relative to PyTorch, i.e. (in_features,
    out_features), so the kernel computes x @ W directly.  Biases are 2-D
    (1, out) for TPU layout friendliness.
    """
    dims = [(z_dim, 80), (80, 80), (80, 40), (40, num_classes)]
    params = []
    for fin, fout in dims:
        kw, kb, key = jax.random.split(key, 3)
        bound = 1.0 / jnp.sqrt(jnp.float32(fin))
        w = jax.random.uniform(kw, (fin, fout), dtype, -bound, bound)
        b = jax.random.uniform(kb, (1, fout), dtype, -bound, bound)
        params += [w, b]
    return params


def _pad_and_cast_params(params):
    """Zero-pad feature dims to 128; weights -> bf16, biases -> f32.

    Zero padding is exact: padded activation columns stay exactly 0 through
    bias-add (pad bias = 0) and LeakyReLU, and padded weight rows are 0, so
    the valid columns of every layer are bit-identical to the unpadded math.
    """
    w1, b1, w2, b2, w3, b3, w4, b4 = params

    def pad_w(w, pad_in, pad_out):
        fin, fout = w.shape
        return jnp.pad(w, ((0, pad_in - fin), (0, pad_out - fout))).astype(jnp.bfloat16)

    def pad_b(b, pad_out):
        return jnp.pad(b, ((0, 0), (0, pad_out - b.shape[1]))).astype(jnp.float32)

    z_dim = w1.shape[0]
    return [
        pad_w(w1, z_dim, _PAD), pad_b(b1, _PAD),
        pad_w(w2, _PAD, _PAD),  pad_b(b2, _PAD),
        pad_w(w3, _PAD, _PAD),  pad_b(b3, _PAD),
        pad_w(w4, _PAD, _PAD),  pad_b(b4, _PAD),
    ]


def _round_up(x, m):
    return (x + m - 1) // m * m


def property_model_forward(z, params, num_classes, tb=512):
    """Forward pass of Property_model. z: (B, z_dim) float32."""
    B, z_dim = z.shape

    # Batch tile: multiple of 8, capped at `tb`; pad batch to a multiple of it.
    TB = min(tb, _round_up(B, 8))
    Bp = _round_up(B, TB)

    z_p = jnp.pad(z, ((0, Bp - B), (0, 0))).astype(jnp.bfloat16)
    padded_params = _pad_and_cast_params(params)

    grid = (pl.cdiv(Bp, TB),)

    # z / out stream over the batch grid; weights & biases are grid-invariant
    # (index_map always (0,0)) so their DMA is elided after the first step.
    in_specs = [pl.BlockSpec((TB, z_dim), lambda i: (i, 0))] + [
        pl.BlockSpec(p.shape, lambda i: (0, 0)) for p in padded_params
    ]
    out_specs = pl.BlockSpec((TB, _PAD), lambda i: (i, 0))
    out_shape = jax.ShapeDtypeStruct((Bp, _PAD), jnp.float32)

    out = pl.pallas_call(
        _property_model_kernel,
        out_shape=out_shape,
        grid=grid,
        in_specs=in_specs,
        out_specs=out_specs,
        compiler_params=pltpu.CompilerParams(
            dimension_semantics=("parallel",)),
    )(z_p, *padded_params)

    out = out[:B, :num_classes]
    if num_classes == 1:
        out = out.reshape(-1)  # mirrors x.flatten() in the PyTorch module
    return out


def _reference_forward(z, params, num_classes):
    """Pure-JAX f32 reference for correctness checking."""
    w1, b1, w2, b2, w3, b3, w4, b4 = params

    def lrelu(x):
        return jnp.where(x > 0, x, 0.2 * x)

    x = lrelu(z @ w1 + b1)
    x = lrelu(x @ w2 + b2)
    x = lrelu(x @ w3 + b3)
    x = x @ w4 + b4
    if num_classes == 1:
        x = x.reshape(-1)
    return x


if __name__ == "__main__":
    B = 8          # batch
    Z_DIM = 32     # latent dim
    NUM_CLASSES = 1

    key = jax.random.PRNGKey(0)
    kz, kp = jax.random.split(key)
    z = jax.random.normal(kz, (B, Z_DIM), jnp.float32)
    params = init_property_model_params(kp, Z_DIM, NUM_CLASSES)

    out = property_model_forward(z, params, NUM_CLASSES)
    out = jax.block_until_ready(out)

    ref = _reference_forward(z, params, NUM_CLASSES)
    assert out.shape == ref.shape, (out.shape, ref.shape)
    # bf16 matmul inputs (f32 accumulation) -> loosen tolerance vs f32 reference.
    assert jnp.allclose(out, ref, atol=5e-2, rtol=5e-2), "mismatch vs reference"

    print("KERNEL_OK")
</pallas_src>

<mosaic_0001>
module attributes {stable_mosaic.version = 11 : i64} {
  func.func @_property_model_kernel(%arg0: i32, %arg1: memref<8x32xbf16, #tpu.memory_space<vmem>>, %arg2: memref<32x128xbf16, #tpu.memory_space<vmem>>, %arg3: memref<1x128xf32, #tpu.memory_space<vmem>>, %arg4: memref<128x128xbf16, #tpu.memory_space<vmem>>, %arg5: memref<1x128xf32, #tpu.memory_space<vmem>>, %arg6: memref<128x128xbf16, #tpu.memory_space<vmem>>, %arg7: memref<1x128xf32, #tpu.memory_space<vmem>>, %arg8: memref<128x128xbf16, #tpu.memory_space<vmem>>, %arg9: memref<1x128xf32, #tpu.memory_space<vmem>>, %arg10: memref<8x128xf32, #tpu.memory_space<vmem>>) attributes {dimension_semantics = [#tpu.dimension_semantics<parallel>], iteration_bounds = array<i64: 1>, scalar_prefetch = 0 : i64, scratch_operands = 0 : i64, tpu.core_type = #tpu.core_type<tc>, window_params = [{transform_indices = @transform_0, window_bounds = array<i64: 8, 32>}, {pipeline_mode = #tpu.pipeline_mode<synchronous>, transform_indices = @transform_1, window_bounds = array<i64: 32, 128>}, {pipeline_mode = #tpu.pipeline_mode<synchronous>, transform_indices = @transform_2, window_bounds = array<i64: 1, 128>}, {pipeline_mode = #tpu.pipeline_mode<synchronous>, transform_indices = @transform_3, window_bounds = array<i64: 128, 128>}, {pipeline_mode = #tpu.pipeline_mode<synchronous>, transform_indices = @transform_4, window_bounds = array<i64: 1, 128>}, {pipeline_mode = #tpu.pipeline_mode<synchronous>, transform_indices = @transform_5, window_bounds = array<i64: 128, 128>}, {pipeline_mode = #tpu.pipeline_mode<synchronous>, transform_indices = @transform_6, window_bounds = array<i64: 1, 128>}, {pipeline_mode = #tpu.pipeline_mode<synchronous>, transform_indices = @transform_7, window_bounds = array<i64: 128, 128>}, {pipeline_mode = #tpu.pipeline_mode<synchronous>, transform_indices = @transform_8, window_bounds = array<i64: 1, 128>}, {transform_indices = @transform_9, window_bounds = array<i64: 8, 128>}]} {
    %c0 = arith.constant 0 : index
    %c0_0 = arith.constant 0 : index
    %0 = vector.load %arg1[%c0, %c0_0] : memref<8x32xbf16, #tpu.memory_space<vmem>>, vector<8x32xbf16>
    %c0_1 = arith.constant 0 : index
    %c0_2 = arith.constant 0 : index
    %1 = vector.load %arg2[%c0_1, %c0_2] : memref<32x128xbf16, #tpu.memory_space<vmem>>, vector<32x128xbf16>
    %cst = arith.constant dense<0.000000e+00> : vector<8x128xf32>
    %2 = tpu.matmul %0, %1, %cst {dimension_numbers = #tpu.dot_dimension_numbers<[1], [0], [0], [1], [0, 0, 1, 1], [], []>} : vector<8x32xbf16>, vector<32x128xbf16>, vector<8x128xf32> -> vector<8x128xf32>
    %c0_3 = arith.constant 0 : index
    %c0_4 = arith.constant 0 : index
    %3 = vector.load %arg3[%c0_3, %c0_4] : memref<1x128xf32, #tpu.memory_space<vmem>>, vector<1x128xf32>
    %4 = vector.broadcast %3 : vector<1x128xf32> to vector<8x128xf32>
    %5 = arith.addf %2, %4 : vector<8x128xf32>
    %cst_5 = arith.constant 2.000000e-01 : f32
    %6 = vector.broadcast %cst_5 : f32 to vector<8x128xf32>
    %7 = arith.mulf %6, %5 : vector<8x128xf32>
    %8 = arith.maximumf %5, %7 : vector<8x128xf32>
    %9 = arith.truncf %8 : vector<8x128xf32> to vector<8x128xbf16>
    %c0_6 = arith.constant 0 : index
    %c0_7 = arith.constant 0 : index
    %10 = vector.load %arg4[%c0_6, %c0_7] : memref<128x128xbf16, #tpu.memory_space<vmem>>, vector<128x128xbf16>
    %cst_8 = arith.constant dense<0.000000e+00> : vector<8x128xf32>
    %11 = tpu.matmul %9, %10, %cst_8 {dimension_numbers = #tpu.dot_dimension_numbers<[1], [0], [0], [1], [0, 0, 1, 1], [], []>} : vector<8x128xbf16>, vector<128x128xbf16>, vector<8x128xf32> -> vector<8x128xf32>
    %c0_9 = arith.constant 0 : index
    %c0_10 = arith.constant 0 : index
    %12 = vector.load %arg5[%c0_9, %c0_10] : memref<1x128xf32, #tpu.memory_space<vmem>>, vector<1x128xf32>
    %13 = vector.broadcast %12 : vector<1x128xf32> to vector<8x128xf32>
    %14 = arith.addf %11, %13 : vector<8x128xf32>
    %cst_11 = arith.constant 2.000000e-01 : f32
    %15 = vector.broadcast %cst_11 : f32 to vector<8x128xf32>
    %16 = arith.mulf %15, %14 : vector<8x128xf32>
    %17 = arith.maximumf %14, %16 : vector<8x128xf32>
    %18 = arith.truncf %17 : vector<8x128xf32> to vector<8x128xbf16>
    %c0_12 = arith.constant 0 : index
    %c0_13 = arith.constant 0 : index
    %19 = vector.load %arg6[%c0_12, %c0_13] : memref<128x128xbf16, #tpu.memory_space<vmem>>, vector<128x128xbf16>
    %cst_14 = arith.constant dense<0.000000e+00> : vector<8x128xf32>
    %20 = tpu.matmul %18, %19, %cst_14 {dimension_numbers = #tpu.dot_dimension_numbers<[1], [0], [0], [1], [0, 0, 1, 1], [], []>} : vector<8x128xbf16>, vector<128x128xbf16>, vector<8x128xf32> -> vector<8x128xf32>
    %c0_15 = arith.constant 0 : index
    %c0_16 = arith.constant 0 : index
    %21 = vector.load %arg7[%c0_15, %c0_16] : memref<1x128xf32, #tpu.memory_space<vmem>>, vector<1x128xf32>
    %22 = vector.broadcast %21 : vector<1x128xf32> to vector<8x128xf32>
    %23 = arith.addf %20, %22 : vector<8x128xf32>
    %cst_17 = arith.constant 2.000000e-01 : f32
    %24 = vector.broadcast %cst_17 : f32 to vector<8x128xf32>
    %25 = arith.mulf %24, %23 : vector<8x128xf32>
    %26 = arith.maximumf %23, %25 : vector<8x128xf32>
    %27 = arith.truncf %26 : vector<8x128xf32> to vector<8x128xbf16>
    %c0_18 = arith.constant 0 : index
    %c0_19 = arith.constant 0 : index
    %28 = vector.load %arg8[%c0_18, %c0_19] : memref<128x128xbf16, #tpu.memory_space<vmem>>, vector<128x128xbf16>
    %cst_20 = arith.constant dense<0.000000e+00> : vector<8x128xf32>
    %29 = tpu.matmul %27, %28, %cst_20 {dimension_numbers = #tpu.dot_dimension_numbers<[1], [0], [0], [1], [0, 0, 1, 1], [], []>} : vector<8x128xbf16>, vector<128x128xbf16>, vector<8x128xf32> -> vector<8x128xf32>
    %c0_21 = arith.constant 0 : index
    %c0_22 = arith.constant 0 : index
    %30 = vector.load %arg9[%c0_21, %c0_22] : memref<1x128xf32, #tpu.memory_space<vmem>>, vector<1x128xf32>
    %31 = vector.broadcast %30 : vector<1x128xf32> to vector<8x128xf32>
    %32 = arith.addf %29, %31 : vector<8x128xf32>
    %c0_23 = arith.constant 0 : index
    %c0_24 = arith.constant 0 : index
    %33 = vector.load %arg10[%c0_23, %c0_24] : memref<8x128xf32, #tpu.memory_space<vmem>>, vector<8x128xf32>
    tpu.vector_store %arg10[%c0_23, %c0_24], %32 {strides = array<i32>} : memref<8x128xf32, #tpu.memory_space<vmem>>, vector<8x128xf32>,
    return
  }
  func.func @transform_0(%arg0: i32) -> (i32, i32) {
    %c0_i32 = arith.constant 0 : i32
    %c0_i32_0 = arith.constant 0 : i32
    return %arg0, %c0_i32 : i32, i32
  }
  func.func @transform_1(%arg0: i32) -> (i32, i32) {
    %c0_i32 = arith.constant 0 : i32
    %c0_i32_0 = arith.constant 0 : i32
    %c0_i32_1 = arith.constant 0 : i32
    return %c0_i32, %c0_i32_0 : i32, i32
  }
  func.func @transform_2(%arg0: i32) -> (i32, i32) {
    %c0_i32 = arith.constant 0 : i32
    %c0_i32_0 = arith.constant 0 : i32
    %c0_i32_1 = arith.constant 0 : i32
    return %c0_i32, %c0_i32_0 : i32, i32
  }
  func.func @transform_3(%arg0: i32) -> (i32, i32) {
    %c0_i32 = arith.constant 0 : i32
    %c0_i32_0 = arith.constant 0 : i32
    %c0_i32_1 = arith.constant 0 : i32
    return %c0_i32, %c0_i32_0 : i32, i32
  }
  func.func @transform_4(%arg0: i32) -> (i32, i32) {
    %c0_i32 = arith.constant 0 : i32
    %c0_i32_0 = arith.constant 0 : i32
    %c0_i32_1 = arith.constant 0 : i32
    return %c0_i32, %c0_i32_0 : i32, i32
  }
  func.func @transform_5(%arg0: i32) -> (i32, i32) {
    %c0_i32 = arith.constant 0 : i32
    %c0_i32_0 = arith.constant 0 : i32
    %c0_i32_1 = arith.constant 0 : i32
    return %c0_i32, %c0_i32_0 : i32, i32
  }
  func.func @transform_6(%arg0: i32) -> (i32, i32) {
    %c0_i32 = arith.constant 0 : i32
    %c0_i32_0 = arith.constant 0 : i32
    %c0_i32_1 = arith.constant 0 : i32
    return %c0_i32, %c0_i32_0 : i32, i32
  }
  func.func @transform_7(%arg0: i32) -> (i32, i32) {
    %c0_i32 = arith.constant 0 : i32
    %c0_i32_0 = arith.constant 0 : i32
    %c0_i32_1 = arith.constant 0 : i32
    return %c0_i32, %c0_i32_0 : i32, i32
  }
  func.func @transform_8(%arg0: i32) -> (i32, i32) {
    %c0_i32 = arith.constant 0 : i32
    %c0_i32_0 = arith.constant 0 : i32
    %c0_i32_1 = arith.constant 0 : i32
    return %c0_i32, %c0_i32_0 : i32, i32
  }
  func.func @transform_9(%arg0: i32) -> (i32, i32) {
    %c0_i32 = arith.constant 0 : i32
    %c0_i32_0 = arith.constant 0 : i32
    return %arg0, %c0_i32 : i32, i32
  }
}

</mosaic_0001>

<llo_original>
// kernel: tpu_custom_call.1
$region0: #{tpu_custom_call.1}
  #allocation0 [shape = 'u32[]', space=smem, size = 0x4, offset = 0x4, fixed_abs, tag = 'smem constant byte address 0x4 - core index']
  #allocation1 [shape = 'u32[144,128]{1,0:T(1,128)}', space=vmem, size = 0x12000, scoped, tag = 'internal scratch']
  %s0 = inlined_call_operand.hbm [shape: bf16[8,32], index: 0, kind: input, shape index: {}]
  %s1 = inlined_call_operand.hbm [shape: bf16[32,128], index: 1, kind: input, shape index: {}]
  %s2 = inlined_call_operand.vmem [shape: f32[1,128], index: 2, kind: input, shape index: {}]
  %s3 = inlined_call_operand.hbm [shape: bf16[128,128], index: 3, kind: input, shape index: {}]
  %s4 = inlined_call_operand.vmem [shape: f32[1,128], index: 4, kind: input, shape index: {}]
  %s5 = inlined_call_operand.hbm [shape: bf16[128,128], index: 5, kind: input, shape index: {}]
  %s6 = inlined_call_operand.vmem [shape: f32[1,128], index: 6, kind: input, shape index: {}]
  %s7 = inlined_call_operand.hbm [shape: bf16[128,128], index: 7, kind: input, shape index: {}]
  %s8 = inlined_call_operand.vmem [shape: f32[1,128], index: 8, kind: input, shape index: {}]
  %s9 = inlined_call_operand.hbm [shape: f32[8,128], index: 9, kind: output, shape index: {}]
  %s10 = sld [smem:[#allocation0]]
  $region66: #{tpu_custom_call.1} parent=0
    _
  %s12 = ssub.s32 1, %s10
  %s13 = scalar_select 0, %s12, %s10
  $region1: #{tpu_custom_call.1} parent=0
    #allocation2 [shape = 'u8[2048]{0}', space=vmem, size = 0x800, scoped, tag = 'input window, operand 0, single buffered']
    #allocation3 [shape = 's32[1]{0}', space=sflag, size = 0x4, scoped, tag = 'scoped memory for tpu_custom_call.1']
    #allocation4 [shape = 's32[1]{0}', space=sflag, size = 0x4, scoped, tag = 'scoped memory for tpu_custom_call.1']
    #allocation5 [shape = 'u8[8192]{0}', space=vmem, size = 0x2000, scoped, tag = 'input window, operand 1, single buffered']
    #allocation6 [shape = 's32[1]{0}', space=sflag, size = 0x4, scoped, tag = 'scoped memory for tpu_custom_call.1']
    #allocation7 [shape = 'u8[32768]{0}', space=vmem, size = 0x8000, scoped, tag = 'input window, operand 3, single buffered']
    #allocation8 [shape = 'u8[32768]{0}', space=vmem, size = 0x8000, scoped, tag = 'input window, operand 5, single buffered']
    #allocation9 [shape = 's32[1]{0}', space=sflag, size = 0x4, scoped, tag = 'scoped memory for tpu_custom_call.1']
    #allocation10 [shape = 'u8[32768]{0}', space=vmem, size = 0x8000, scoped, tag = 'input window, operand 7, single buffered']
    #allocation11 [shape = 'u8[4096]{0}', space=vmem, size = 0x1000, scoped, tag = 'output window, operand 0, single buffered']
    %14 = vsyncpa [#allocation3], 0
    %15 = vsyncpa [#allocation6], 0
    %16 = vsyncpa [#allocation9], 0
    %17 = vsyncpa [#allocation4], 0
    // Predicated region
    $region2: #{tpu_custom_call.1} parent=1 // pred_check
      _
    $region3: #{tpu_custom_call.1} parent=1 // pred_check_branch
      %19 = sbr.rel (0) target = $region5
    $region4: #{tpu_custom_call.1} parent=1 // pred_region
      %s21 = ssub.s32 64, 64
      %22 = vsyncadd [#allocation3], %s21
      %s24 = sshll.u32 [#allocation2], 4
      %s25 = int_to_ptr.vmem [resolvable:$true] %s24
      %27 = dma.hbm_to_vmem [thread:$0]  %s0, 64, %s25, [#allocation3]
    $region5: #{tpu_custom_call.1} parent=1 // pred_fallthru
      _
    // Predicated region
    $region6: #{tpu_custom_call.1} parent=1 // pred_check
      _
    $region7: #{tpu_custom_call.1} parent=1 // pred_check_branch
      %29 = sbr.rel (0) target = $region9
    $region8: #{tpu_custom_call.1} parent=1 // pred_region
      %s31 = ssub.s32 256, 256
      %32 = vsyncadd [#allocation6], %s31
      %s33 = sshll.u32 [#allocation5], 4
      %s34 = int_to_ptr.vmem [resolvable:$true] %s33
      %39 = dma.hbm_to_vmem [thread:$0]  %s1, 256, %s34, [#allocation6], 64, 64, 4
    $region9: #{tpu_custom_call.1} parent=1 // pred_fallthru
      _
    // Predicated region
    $region10: #{tpu_custom_call.1} parent=1 // pred_check
      _
    $region11: #{tpu_custom_call.1} parent=1 // pred_check_branch
      %41 = sbr.rel (0) target = $region13
    $region12: #{tpu_custom_call.1} parent=1 // pred_region
      _
    $region13: #{tpu_custom_call.1} parent=1 // pred_fallthru
      _
    // Predicated region
    $region14: #{tpu_custom_call.1} parent=1 // pred_check
      _
    $region15: #{tpu_custom_call.1} parent=1 // pred_check_branch
      %43 = sbr.rel (0) target = $region17
    $region16: #{tpu_custom_call.1} parent=1 // pred_region
      %s45 = ssub.s32 1024, 1024
      %46 = vsyncadd [#allocation6], %s45
      %s47 = sshll.u32 [#allocation7], 4
      %s48 = int_to_ptr.vmem [resolvable:$true] %s47
      %53 = dma.hbm_to_vmem [thread:$0]  %s3, 1024, %s48, [#allocation6], 64, 64, 4
    $region17: #{tpu_custom_call.1} parent=1 // pred_fallthru
      _
    // Predicated region
    $region18: #{tpu_custom_call.1} parent=1 // pred_check
      _
    $region19: #{tpu_custom_call.1} parent=1 // pred_check_branch
      %55 = sbr.rel (0) target = $region21
    $region20: #{tpu_custom_call.1} parent=1 // pred_region
      _
    $region21: #{tpu_custom_call.1} parent=1 // pred_fallthru
      _
    // Predicated region
    $region22: #{tpu_custom_call.1} parent=1 // pred_check
      _
    $region23: #{tpu_custom_call.1} parent=1 // pred_check_branch
      %57 = sbr.rel (0) target = $region25
    $region24: #{tpu_custom_call.1} parent=1 // pred_region
      %s59 = ssub.s32 1024, 1024
      %60 = vsyncadd [#allocation9], %s59
      %s61 = sshll.u32 [#allocation8], 4
      %s62 = int_to_ptr.vmem [resolvable:$true] %s61
      %67 = dma.hbm_to_vmem [thread:$0]  %s5, 1024, %s62, [#allocation9], 64, 64, 4
    $region25: #{tpu_custom_call.1} parent=1 // pred_fallthru
      _
    // Predicated region
    $region26: #{tpu_custom_call.1} parent=1 // pred_check
      _
    $region27: #{tpu_custom_call.1} parent=1 // pred_check_branch
      %69 = sbr.rel (0) target = $region29
    $region28: #{tpu_custom_call.1} parent=1 // pred_region
      _
    $region29: #{tpu_custom_call.1} parent=1 // pred_fallthru
      _
    // Predicated region
    $region30: #{tpu_custom_call.1} parent=1 // pred_check
      _
    $region31: #{tpu_custom_call.1} parent=1 // pred_check_branch
      %71 = sbr.rel (0) target = $region33
    $region32: #{tpu_custom_call.1} parent=1 // pred_region
      %s73 = ssub.s32 1024, 1024
      %74 = vsyncadd [#allocation9], %s73
      %s75 = sshll.u32 [#allocation10], 4
      %s76 = int_to_ptr.vmem [resolvable:$true] %s75
      %81 = dma.hbm_to_vmem [thread:$0]  %s7, 1024, %s76, [#allocation9], 64, 64, 4
    $region33: #{tpu_custom_call.1} parent=1 // pred_fallthru
      _
    // Predicated region
    $region34: #{tpu_custom_call.1} parent=1 // pred_check
      _
    $region35: #{tpu_custom_call.1} parent=1 // pred_check_branch
      %83 = sbr.rel (0) target = $region37
    $region36: #{tpu_custom_call.1} parent=1 // pred_region
      _
    $region37: #{tpu_custom_call.1} parent=1 // pred_fallthru
      _
    // Predicated region
    $region38: #{tpu_custom_call.1} parent=1 // pred_check
      _
    $region39: #{tpu_custom_call.1} parent=1 // pred_check_branch
      %85 = sbr.rel (0) target = $region41
    $region40: #{tpu_custom_call.1} parent=1 // pred_region
      %86 = dma.done [#allocation3], 64
    $region41: #{tpu_custom_call.1} parent=1 // pred_fallthru
      _
    // Predicated region
    $region42: #{tpu_custom_call.1} parent=1 // pred_check
      _
    $region43: #{tpu_custom_call.1} parent=1 // pred_check_branch
      %88 = sbr.rel (0) target = $region45
    $region44: #{tpu_custom_call.1} parent=1 // pred_region
      %89 = dma.done [#allocation6], 256
    $region45: #{tpu_custom_call.1} parent=1 // pred_fallthru
      _
    // Predicated region
    $region46: #{tpu_custom_call.1} parent=1 // pred_check
      _
    $region47: #{tpu_custom_call.1} parent=1 // pred_check_branch
      %91 = sbr.rel (0) target = $region49
    $region48: #{tpu_custom_call.1} parent=1 // pred_region
      %92 = dma.done [#allocation6], 1024
    $region49: #{tpu_custom_call.1} parent=1 // pred_fallthru
      _
    // Predicated region
    $region50: #{tpu_custom_call.1} parent=1 // pred_check
      _
    $region51: #{tpu_custom_call.1} parent=1 // pred_check_branch
      %94 = sbr.rel (0) target = $region53
    $region52: #{tpu_custom_call.1} parent=1 // pred_region
      %95 = dma.done [#allocation9], 1024
    $region53: #{tpu_custom_call.1} parent=1 // pred_fallthru
      _
    // Predicated region
    $region54: #{tpu_custom_call.1} parent=1 // pred_check
      _
    $region55: #{tpu_custom_call.1} parent=1 // pred_check_branch
      %97 = sbr.rel (0) target = $region57
    $region56: #{tpu_custom_call.1} parent=1 // pred_region
      %98 = dma.done [#allocation9], 1024
    $region57: #{tpu_custom_call.1} parent=1 // pred_fallthru
      _
    %v100 = vld [vmem:[#allocation2] sm:$0xf]
    %v101 = vld [vmem:[#allocation5] sm:$0xf]
    %v102 = vld [vmem:[#allocation5 + $0x4] sm:$0xf]
    %v103 = vld [vmem:[#allocation5 + $0x8] sm:$0xf]
    %v104 = vld [vmem:[#allocation5 + $0xc] sm:$0xf]
    %v105 = vld [vmem:[%s2] sm:$0x1]
    %v107 = vlaneseq
    %v108 = vshrl.u32 %v107, 7
    %v109 = vsub.s32 0, %v108
    %v110 = vrot.slane %v105, %v109
    %v116 = vunpack.c.l.b16 %v101
    %v117 = vunpack.c.l.b16 %v102
    %v118 = vunpack.c.l.b16 %v103
    %v119 = vunpack.c.l.b16 %v104
    %v120 = vpack.c.b16 %v117, %v116
    %v121 = vpack.c.b16 %v119, %v118
    %vm124 = vcmask 261120
    %v126 = vsel %vm124, %v100, 0
    %128 = vmatprep.subr.bf16.mxu0 0
    %129 = vmatpush1.bf16.msra.mxu0 %v120
    %130 = vmatprep.subr.bf16.mxu0 0
    %131 = vmatpush1.bf16.msra.mxu0 %v121
    %132 = vmatprep.subr.bf16.mxu0 0
    %133 = vmatpush1.bf16.msra.mxu0 0
    %134 = vmatprep.subr.bf16.mxu0 0
    %135 = vmatpush1.bf16.msra.mxu0 0
    %136 = vmatprep.subr.bf16.mxu0 0
    %137 = vmatpush1.bf16.msra.mxu0 0
    %138 = vmatprep.subr.bf16.mxu0 0
    %139 = vmatpush1.bf16.msra.mxu0 0
    %140 = vmatprep.subr.bf16.mxu0 0
    %141 = vmatpush1.bf16.msra.mxu0 0
    %142 = vmatprep.subr.bf16.mxu0 0
    %143 = vmatpush1.bf16.msra.mxu0 0
    %144 = vmatprep.subr.bf16.mxu0 0
    %145 = vmatpush1.bf16.msra.mxu0 0
    %146 = vmatprep.subr.bf16.mxu0 0
    %147 = vmatpush1.bf16.msra.mxu0 0
    %148 = vmatprep.subr.bf16.mxu0 0
    %149 = vmatpush1.bf16.msra.mxu0 0
    %150 = vmatprep.subr.bf16.mxu0 0
    %151 = vmatpush1.bf16.msra.mxu0 0
    %152 = vmatprep.subr.bf16.mxu0 0
    %153 = vmatpush1.bf16.msra.mxu0 0
    %154 = vmatprep.subr.bf16.mxu0 0
    %155 = vmatpush1.bf16.msra.mxu0 0
    %156 = vmatprep.subr.bf16.mxu0 0
    %157 = vmatpush1.bf16.msra.mxu0 0
    %158 = vmatprep.subr.bf16.mxu0 0
    %159 = vmatpush1.bf16.msra.mxu0 0
    %160 = vmatprep.mubr.bf16.mxu0 0
    %161 = vmatmul.mubr.bf16.gmra.mrb[0].mxu0 %v126
    %v162 = vpop.f32.mrb[0].mxu0
    %v163 = vadd.f32 %v110, %v162
    %v164 = vpop.f32.mrb[0].mxu0
    %v165 = vpop.f32.mrb[0].mxu0
    %v166 = vpop.f32.mrb[0].mxu0
    %167 = vdwg.mxu0
    %v168 = vmul.f32 %v163, 0.2
    %v169 = vmax.f32 %v163, %v168
    %v170 = vpack.c.bf16 %v169, %v169
    %v171 = vld [vmem:[#allocation7] sm:$0xf]
    %v172 = vld [vmem:[#allocation7 + $0x4] sm:$0xf]
    %v173 = vld [vmem:[#allocation7 + $0x8] sm:$0xf]
    %v174 = vld [vmem:[#allocation7 + $0xc] sm:$0xf]
    %v175 = vld [vmem:[#allocation7 + $0x10] sm:$0xf]
    %v176 = vld [vmem:[#allocation7 + $0x14] sm:$0xf]
    %v177 = vld [vmem:[#allocation7 + $0x18] sm:$0xf]
    %v178 = vld [vmem:[#allocation7 + $0x1c] sm:$0xf]
    %v179 = vld [vmem:[#allocation7 + $0x20] sm:$0xf]
    %v180 = vld [vmem:[#allocation7 + $0x24] sm:$0xf]
    %v181 = vld [vmem:[#allocation7 + $0x28] sm:$0xf]
    %v182 = vld [vmem:[#allocation7 + $0x2c] sm:$0xf]
    %v183 = vld [vmem:[#allocation7 + $0x30] sm:$0xf]
    %v184 = vld [vmem:[#allocation7 + $0x34] sm:$0xf]
    %v185 = vld [vmem:[#allocation7 + $0x38] sm:$0xf]
    %v186 = vld [vmem:[#allocation7 + $0x3c] sm:$0xf]
    %v187 = vld [vmem:[%s4] sm:$0x1]
    %v189 = vlaneseq
    %v190 = vshrl.u32 %v189, 7
    %v191 = vsub.s32 0, %v190
    %v192 = vrot.slane %v187, %v191
    %v210 = vunpack.c.l.b16 %v171
    %v211 = vunpack.c.l.b16 %v172
    %v212 = vunpack.c.l.b16 %v173
    %v213 = vunpack.c.l.b16 %v174
    %v214 = vunpack.c.l.b16 %v175
    %v215 = vunpack.c.l.b16 %v176
    %v216 = vunpack.c.l.b16 %v177
    %v217 = vunpack.c.l.b16 %v178
    %v218 = vunpack.c.l.b16 %v179
    %v219 = vunpack.c.l.b16 %v180
    %v220 = vunpack.c.l.b16 %v181
    %v221 = vunpack.c.l.b16 %v182
    %v222 = vunpack.c.l.b16 %v183
    %v223 = vunpack.c.l.b16 %v184
    %v224 = vunpack.c.l.b16 %v185
    %v225 = vunpack.c.l.b16 %v186
    %v226 = vpack.c.b16 %v211, %v210
    %v227 = vpack.c.b16 %v213, %v212
    %v228 = vpack.c.b16 %v215, %v214
    %v229 = vpack.c.b16 %v217, %v216
    %v230 = vpack.c.b16 %v219, %v218
    %v231 = vpack.c.b16 %v221, %v220
    %v232 = vpack.c.b16 %v223, %v222
    %v233 = vpack.c.b16 %v225, %v224
    %242 = vmatprep.subr.bf16.mxu0 0
    %243 = vmatpush1.bf16.msra.mxu0 %v226
    %244 = vmatprep.subr.bf16.mxu0 0
    %245 = vmatpush1.bf16.msra.mxu0 %v227
    %246 = vmatprep.subr.bf16.mxu0 0
    %247 = vmatpush1.bf16.msra.mxu0 %v228
    %248 = vmatprep.subr.bf16.mxu0 0
    %249 = vmatpush1.bf16.msra.mxu0 %v229
    %250 = vmatprep.subr.bf16.mxu0 0
    %251 = vmatpush1.bf16.msra.mxu0 %v230
    %252 = vmatprep.subr.bf16.mxu0 0
    %253 = vmatpush1.bf16.msra.mxu0 %v231
    %254 = vmatprep.subr.bf16.mxu0 0
    %255 = vmatpush1.bf16.msra.mxu0 %v232
    %256 = vmatprep.subr.bf16.mxu0 0
    %257 = vmatpush1.bf16.msra.mxu0 %v233
    %258 = vmatprep.subr.bf16.mxu0 0
    %259 = vmatpush1.bf16.msra.mxu0 0
    %260 = vmatprep.subr.bf16.mxu0 0
    %261 = vmatpush1.bf16.msra.mxu0 0
    %262 = vmatprep.subr.bf16.mxu0 0
    %263 = vmatpush1.bf16.msra.mxu0 0
    %264 = vmatprep.subr.bf16.mxu0 0
    %265 = vmatpush1.bf16.msra.mxu0 0
    %266 = vmatprep.subr.bf16.mxu0 0
    %267 = vmatpush1.bf16.msra.mxu0 0
    %268 = vmatprep.subr.bf16.mxu0 0
    %269 = vmatpush1.bf16.msra.mxu0 0
    %270 = vmatprep.subr.bf16.mxu0 0
    %271 = vmatpush1.bf16.msra.mxu0 0
    %272 = vmatprep.subr.bf16.mxu0 0
    %273 = vmatpush1.bf16.msra.mxu0 0
    %274 = vmatprep.mubr.bf16.mxu0 0
    %275 = vmatmul.mubr.bf16.gmra.mrb[0].mxu0 %v170
    %v276 = vpop.f32.mrb[0].mxu0
    %v277 = vadd.f32 %v192, %v276
    %v278 = vpop.f32.mrb[0].mxu0
    %v279 = vpop.f32.mrb[0].mxu0
    %v280 = vpop.f32.mrb[0].mxu0
    %281 = vdwg.mxu0
    %v282 = vmul.f32 %v277, 0.2
    %v283 = vmax.f32 %v277, %v282
    %v284 = vpack.c.bf16 %v283, %v283
    %v285 = vld [vmem:[#allocation8] sm:$0xf]
    %v286 = vld [vmem:[#allocation8 + $0x4] sm:$0xf]
    %v287 = vld [vmem:[#allocation8 + $0x8] sm:$0xf]
    %v288 = vld [vmem:[#allocation8 + $0xc] sm:$0xf]
    %v289 = vld [vmem:[#allocation8 + $0x10] sm:$0xf]
    %v290 = vld [vmem:[#allocation8 + $0x14] sm:$0xf]
    %v291 = vld [vmem:[#allocation8 + $0x18] sm:$0xf]
    %v292 = vld [vmem:[#allocation8 + $0x1c] sm:$0xf]
    %v293 = vld [vmem:[#allocation8 + $0x20] sm:$0xf]
    %v294 = vld [vmem:[#allocation8 + $0x24] sm:$0xf]
    %v295 = vld [vmem:[#allocation8 + $0x28] sm:$0xf]
    %v296 = vld [vmem:[#allocation8 + $0x2c] sm:$0xf]
    %v297 = vld [vmem:[#allocation8 + $0x30] sm:$0xf]
    %v298 = vld [vmem:[#allocation8 + $0x34] sm:$0xf]
    %v299 = vld [vmem:[#allocation8 + $0x38] sm:$0xf]
    %v300 = vld [vmem:[#allocation8 + $0x3c] sm:$0xf]
    %v301 = vld [vmem:[%s6] sm:$0x1]
    %v303 = vlaneseq
    %v304 = vshrl.u32 %v303, 7
    %v305 = vsub.s32 0, %v304
    %v306 = vrot.slane %v301, %v305
    %v324 = vunpack.c.l.b16 %v285
    %v325 = vunpack.c.l.b16 %v286
    %v326 = vunpack.c.l.b16 %v287
    %v327 = vunpack.c.l.b16 %v288
    %v328 = vunpack.c.l.b16 %v289
    %v329 = vunpack.c.l.b16 %v290
    %v330 = vunpack.c.l.b16 %v291
    %v331 = vunpack.c.l.b16 %v292
    %v332 = vunpack.c.l.b16 %v293
    %v333 = vunpack.c.l.b16 %v294
    %v334 = vunpack.c.l.b16 %v295
    %v335 = vunpack.c.l.b16 %v296
    %v336 = vunpack.c.l.b16 %v297
    %v337 = vunpack.c.l.b16 %v298
    %v338 = vunpack.c.l.b16 %v299
    %v339 = vunpack.c.l.b16 %v300
    %v340 = vpack.c.b16 %v325, %v324
    %v341 = vpack.c.b16 %v327, %v326
    %v342 = vpack.c.b16 %v329, %v328
    %v343 = vpack.c.b16 %v331, %v330
    %v344 = vpack.c.b16 %v333, %v332
    %v345 = vpack.c.b16 %v335, %v334
    %v346 = vpack.c.b16 %v337, %v336
    %v347 = vpack.c.b16 %v339, %v338
    %356 = vmatprep.subr.bf16.mxu0 0
    %357 = vmatpush1.bf16.msra.mxu0 %v340
    %358 = vmatprep.subr.bf16.mxu0 0
    %359 = vmatpush1.bf16.msra.mxu0 %v341
    %360 = vmatprep.subr.bf16.mxu0 0
    %361 = vmatpush1.bf16.msra.mxu0 %v342
    %362 = vmatprep.subr.bf16.mxu0 0
    %363 = vmatpush1.bf16.msra.mxu0 %v343
    %364 = vmatprep.subr.bf16.mxu0 0
    %365 = vmatpush1.bf16.msra.mxu0 %v344
    %366 = vmatprep.subr.bf16.mxu0 0
    %367 = vmatpush1.bf16.msra.mxu0 %v345
    %368 = vmatprep.subr.bf16.mxu0 0
    %369 = vmatpush1.bf16.msra.mxu0 %v346
    %370 = vmatprep.subr.bf16.mxu0 0
    %371 = vmatpush1.bf16.msra.mxu0 %v347
    %372 = vmatprep.subr.bf16.mxu0 0
    %373 = vmatpush1.bf16.msra.mxu0 0
    %374 = vmatprep.subr.bf16.mxu0 0
    %375 = vmatpush1.bf16.msra.mxu0 0
    %376 = vmatprep.subr.bf16.mxu0 0
    %377 = vmatpush1.bf16.msra.mxu0 0
    %378 = vmatprep.subr.bf16.mxu0 0
    %379 = vmatpush1.bf16.msra.mxu0 0
    %380 = vmatprep.subr.bf16.mxu0 0
    %381 = vmatpush1.bf16.msra.mxu0 0
    %382 = vmatprep.subr.bf16.mxu0 0
    %383 = vmatpush1.bf16.msra.mxu0 0
    %384 = vmatprep.subr.bf16.mxu0 0
    %385 = vmatpush1.bf16.msra.mxu0 0
    %386 = vmatprep.subr.bf16.mxu0 0
    %387 = vmatpush1.bf16.msra.mxu0 0
    %388 = vmatprep.mubr.bf16.mxu0 0
    %389 = vmatmul.mubr.bf16.gmra.mrb[0].mxu0 %v284
    %v390 = vpop.f32.mrb[0].mxu0
    %v391 = vadd.f32 %v306, %v390
    %v392 = vpop.f32.mrb[0].mxu0
    %v393 = vpop.f32.mrb[0].mxu0
    %v394 = vpop.f32.mrb[0].mxu0
    %395 = vdwg.mxu0
    %v396 = vmul.f32 %v391, 0.2
    %v397 = vmax.f32 %v391, %v396
    %v398 = vpack.c.bf16 %v397, %v397
    %v399 = vld [vmem:[#allocation10] sm:$0xf]
    %v400 = vld [vmem:[#allocation10 + $0x4] sm:$0xf]
    %v401 = vld [vmem:[#allocation10 + $0x8] sm:$0xf]
    %v402 = vld [vmem:[#allocation10 + $0xc] sm:$0xf]
    %v403 = vld [vmem:[#allocation10 + $0x10] sm:$0xf]
    %v404 = vld [vmem:[#allocation10 + $0x14] sm:$0xf]
    %v405 = vld [vmem:[#allocation10 + $0x18] sm:$0xf]
    %v406 = vld [vmem:[#allocation10 + $0x1c] sm:$0xf]
    %v407 = vld [vmem:[#allocation10 + $0x20] sm:$0xf]
    %v408 = vld [vmem:[#allocation10 + $0x24] sm:$0xf]
    %v409 = vld [vmem:[#allocation10 + $0x28] sm:$0xf]
    %v410 = vld [vmem:[#allocation10 + $0x2c] sm:$0xf]
    %v411 = vld [vmem:[#allocation10 + $0x30] sm:$0xf]
    %v412 = vld [vmem:[#allocation10 + $0x34] sm:$0xf]
    %v413 = vld [vmem:[#allocation10 + $0x38] sm:$0xf]
    %v414 = vld [vmem:[#allocation10 + $0x3c] sm:$0xf]
    %v415 = vld [vmem:[%s8] sm:$0x1]
    %v417 = vlaneseq
    %v418 = vshrl.u32 %v417, 7
    %v419 = vsub.s32 0, %v418
    %v420 = vrot.slane %v415, %v419
    %v438 = vunpack.c.l.b16 %v399
    %v439 = vunpack.c.l.b16 %v400
    %v440 = vunpack.c.l.b16 %v401
    %v441 = vunpack.c.l.b16 %v402
    %v442 = vunpack.c.l.b16 %v403
    %v443 = vunpack.c.l.b16 %v404
    %v444 = vunpack.c.l.b16 %v405
    %v445 = vunpack.c.l.b16 %v406
    %v446 = vunpack.c.l.b16 %v407
    %v447 = vunpack.c.l.b16 %v408
    %v448 = vunpack.c.l.b16 %v409
    %v449 = vunpack.c.l.b16 %v410
    %v450 = vunpack.c.l.b16 %v411
    %v451 = vunpack.c.l.b16 %v412
    %v452 = vunpack.c.l.b16 %v413
    %v453 = vunpack.c.l.b16 %v414
    %v454 = vpack.c.b16 %v439, %v438
    %v455 = vpack.c.b16 %v441, %v440
    %v456 = vpack.c.b16 %v443, %v442
    %v457 = vpack.c.b16 %v445, %v444
    %v458 = vpack.c.b16 %v447, %v446
    %v459 = vpack.c.b16 %v449, %v448
    %v460 = vpack.c.b16 %v451, %v450
    %v461 = vpack.c.b16 %v453, %v452
    %470 = vmatprep.subr.bf16.mxu0 0
    %471 = vmatpush1.bf16.msra.mxu0 %v454
    %472 = vmatprep.subr.bf16.mxu0 0
    %473 = vmatpush1.bf16.msra.mxu0 %v455
    %474 = vmatprep.subr.bf16.mxu0 0
    %475 = vmatpush1.bf16.msra.mxu0 %v456
    %476 = vmatprep.subr.bf16.mxu0 0
    %477 = vmatpush1.bf16.msra.mxu0 %v457
    %478 = vmatprep.subr.bf16.mxu0 0
    %479 = vmatpush1.bf16.msra.mxu0 %v458
    %480 = vmatprep.subr.bf16.mxu0 0
    %481 = vmatpush1.bf16.msra.mxu0 %v459
    %482 = vmatprep.subr.bf16.mxu0 0
    %483 = vmatpush1.bf16.msra.mxu0 %v460
    %484 = vmatprep.subr.bf16.mxu0 0
    %485 = vmatpush1.bf16.msra.mxu0 %v461
    %486 = vmatprep.subr.bf16.mxu0 0
    %487 = vmatpush1.bf16.msra.mxu0 0
    %488 = vmatprep.subr.bf16.mxu0 0
    %489 = vmatpush1.bf16.msra.mxu0 0
    %490 = vmatprep.subr.bf16.mxu0 0
    %491 = vmatpush1.bf16.msra.mxu0 0
    %492 = vmatprep.subr.bf16.mxu0 0
    %493 = vmatpush1.bf16.msra.mxu0 0
    %494 = vmatprep.subr.bf16.mxu0 0
    %495 = vmatpush1.bf16.msra.mxu0 0
    %496 = vmatprep.subr.bf16.mxu0 0
    %497 = vmatpush1.bf16.msra.mxu0 0
    %498 = vmatprep.subr.bf16.mxu0 0
    %499 = vmatpush1.bf16.msra.mxu0 0
    %500 = vmatprep.subr.bf16.mxu0 0
    %501 = vmatpush1.bf16.msra.mxu0 0
    %502 = vmatprep.mubr.bf16.mxu0 0
    %503 = vmatmul.mubr.bf16.gmra.mrb[0].mxu0 %v398
    %v504 = vpop.f32.mrb[0].mxu0
    %v505 = vadd.f32 %v420, %v504
    %v506 = vpop.f32.mrb[0].mxu0
    %v507 = vpop.f32.mrb[0].mxu0
    %v508 = vpop.f32.mrb[0].mxu0
    %509 = vdwg.mxu0
    %510 = vst [vmem:[#allocation11] sm:$0xff] %v505
    // Predicated region
    $region58: #{tpu_custom_call.1} parent=1 // pred_check
      _
    $region59: #{tpu_custom_call.1} parent=1 // pred_check_branch
      %512 = sbr.rel (0) target = $region61
    $region60: #{tpu_custom_call.1} parent=1 // pred_region
      %s514 = ssub.s32 128, 128
      %515 = vsyncadd [#allocation4], %s514
      %s517 = sshll.u32 [#allocation11], 4
      %s518 = int_to_ptr.vmem [resolvable:$true] %s517
      %520 = dma.vmem_to_hbm [thread:$0]  %s518, 128, %s9, [#allocation4]
    $region61: #{tpu_custom_call.1} parent=1 // pred_fallthru
      _
    // Predicated region
    $region62: #{tpu_custom_call.1} parent=1 // pred_check
      _
    $region63: #{tpu_custom_call.1} parent=1 // pred_check_branch
      %522 = sbr.rel (0) target = $region65
    $region64: #{tpu_custom_call.1} parent=1 // pred_region
      %523 = dma.done [#allocation4], 128
    $region65: #{tpu_custom_call.1} parent=1 // pred_fallthru
      _
    %524 = vsyncpa [#allocation3], 1
    %525 = vsyncpa [#allocation6], 1
    %526 = vsyncpa [#allocation9], 1
    %527 = vsyncpa [#allocation4], 1

</llo_original>
